<compile_context>
chip_gen: v5e
topology: v5e:2x2
jax: 0.10.0
libtpu: 0.0.40
codegen_flags: <defaults>
</compile_context>

<pallas_src>
import functools
import math

import jax
import jax.numpy as jnp
from jax import lax
from jax.experimental import pallas as pl
from jax.experimental.pallas import tpu as pltpu

ALPHA = 0.25
GAMMA = 2.0

_LANES = 128
_SINGLE_BLOCK_ROWS = 2048   # <= 1 MiB f32 slab -> one full-extent block
_MAX_BLOCK_ROWS = 4096      # 2 MiB f32 per operand block; 12 MiB double-buffered


def _round_up(x, m):
    return -(-x // m) * m


def _focal_loss_kernel(logits_ref, target_ref, out_ref, *, alpha, gamma):
    x = logits_ref[...].astype(jnp.float32)
    t = target_ref[...].astype(jnp.float32)

    # One EUP exp shared by sigmoid(x), sigmoid(-x) and the softplus term.
    e = jnp.exp(-jnp.abs(x))            # exp(-|x|) in (0, 1]
    inv = 1.0 / (1.0 + e)               # exact divide (approx vrcp too coarse for 1e-5 tol)
    pos = x >= 0.0
    sig_x = jnp.where(pos, inv, e * inv)       # sigmoid(x)
    sig_nx = jnp.where(pos, e * inv, inv)      # sigmoid(-x) = 1 - sigmoid(x)

    # BCE-with-logits (reduction='none'), exact for arbitrary (soft) targets.
    ce = jnp.maximum(x, 0.0) - x * t + jnp.log1p(e)

    # pt = where(t == 1, sigmoid(x), 1 - sigmoid(x))  ->  1 - pt :
    one_minus_pt = jnp.where(t == 1.0, sig_nx, sig_x)

    # alpha_t = t*alpha + (1-t)*(1-alpha), folded to one mul + one add.
    alpha_t = (1.0 - alpha) + t * (2.0 * alpha - 1.0)

    g = float(gamma)
    if g == 2.0:
        focal = one_minus_pt * one_minus_pt          # VPU only, no transcendentals
    elif g.is_integer() and g >= 0.0:
        focal = lax.integer_pow(one_minus_pt, int(g))
    else:
        focal = one_minus_pt ** g                    # non-integer gamma fallback

    out_ref[...] = (alpha_t * focal * ce).astype(out_ref.dtype)


def focal_loss(pred_logits, target, alpha=ALPHA, gamma=GAMMA):
    """Elementwise focal loss; returns an array of the same shape as the inputs."""
    assert pred_logits.shape == target.shape
    orig_shape = pred_logits.shape
    out_dtype = pred_logits.dtype
    n = math.prod(orig_shape)

    # Keep target in its native dtype (saves HBM bandwidth); bool -> int8 only.
    t = target
    if t.dtype == jnp.bool_:
        t = t.astype(jnp.int8)

    x_flat = pred_logits.reshape(-1)
    t_flat = t.reshape(-1)

    # Pad only when the element count is not lane-aligned (128).
    rem = n % _LANES
    needs_pad = rem != 0
    if needs_pad:
        pad = _LANES - rem
        x_flat = jnp.pad(x_flat, (0, pad))
        t_flat = jnp.pad(t_flat, (0, pad))
        padded_n = n + pad
    else:
        padded_n = n
    rows = padded_n // _LANES

    x2d = x_flat.reshape(rows, _LANES)
    t2d = t_flat.reshape(rows, _LANES)

    if rows <= _SINGLE_BLOCK_ROWS:
        # One full-extent block; legal even when rows % 8 != 0. No row padding.
        block_rows = rows
        grid = (1,)
    else:
        # >= 2 grid steps (megacore sharding + DMA/compute pipelining). The
        # ragged last block is masked by Pallas, so no row padding is needed.
        # block_rows stays a multiple of 32 so int8/bf16 target tiles are legal.
        block_rows = min(_MAX_BLOCK_ROWS, _round_up(pl.cdiv(rows, 2), 32))
        grid = (pl.cdiv(rows, block_rows),)

    kernel = functools.partial(
        _focal_loss_kernel, alpha=float(alpha), gamma=float(gamma))

    elem_bytes = (jnp.dtype(pred_logits.dtype).itemsize
                  + jnp.dtype(t.dtype).itemsize
                  + jnp.dtype(out_dtype).itemsize)
    cost = pl.CostEstimate(
        flops=12 * padded_n,
        transcendentals=3 * padded_n,
        bytes_accessed=elem_bytes * padded_n,
    )

    out2d = pl.pallas_call(
        kernel,
        out_shape=jax.ShapeDtypeStruct((rows, _LANES), out_dtype),
        grid_spec=pltpu.PrefetchScalarGridSpec(
            num_scalar_prefetch=0,
            grid=grid,
            in_specs=[
                pl.BlockSpec((block_rows, _LANES), lambda i: (i, 0)),
                pl.BlockSpec((block_rows, _LANES), lambda i: (i, 0)),
            ],
            out_specs=pl.BlockSpec((block_rows, _LANES), lambda i: (i, 0)),
        ),
        compiler_params=pltpu.CompilerParams(
            dimension_semantics=("parallel",),
            vmem_limit_bytes=32 << 20,
        ),
        cost_estimate=cost,
    )(x2d, t2d)

    if needs_pad:
        return out2d.reshape(-1)[:n].reshape(orig_shape)
    return out2d.reshape(orig_shape)


def _focal_loss_ref(pred_logits, target, alpha=ALPHA, gamma=GAMMA):
    """Pure-JAX mirror of the PyTorch module semantics."""
    pred = jax.nn.sigmoid(pred_logits)
    ce = (jnp.maximum(pred_logits, 0.0) - pred_logits * target
          + jnp.log1p(jnp.exp(-jnp.abs(pred_logits))))
    alpha_t = target * alpha + (1.0 - target) * (1.0 - alpha)
    pt = jnp.where(target == 1.0, pred, 1.0 - pred)
    return alpha_t * (1.0 - pt) ** gamma * ce


if __name__ == "__main__":
    key = jax.random.PRNGKey(0)
    k1, k2 = jax.random.split(key)

    shape = (2, 4, 16, 16)  # NCHW-style classification head output
    pred_logits = jax.random.normal(k1, shape, dtype=jnp.float32) * 2.0
    # Binary targets (0/1), as produced by the RetinaNet target assigner.
    target = (jax.random.uniform(k2, shape) > 0.8).astype(jnp.float32)

    out = focal_loss(pred_logits, target)
    out = jax.block_until_ready(out)

    ref = _focal_loss_ref(pred_logits, target)
    assert out.shape == shape
    assert jnp.allclose(out, ref, atol=1e-5, rtol=1e-5), "mismatch vs reference"

    print("KERNEL_OK")
</pallas_src>

<mosaic_0001>
module attributes {stable_mosaic.version = 11 : i64} {
  func.func @_focal_loss_kernel(%arg0: i32, %arg1: memref<16x128xf32, #tpu.memory_space<vmem>>, %arg2: memref<16x128xf32, #tpu.memory_space<vmem>>, %arg3: memref<16x128xf32, #tpu.memory_space<vmem>>) attributes {dimension_semantics = [#tpu.dimension_semantics<parallel>], iteration_bounds = array<i64: 1>, scalar_prefetch = 0 : i64, scratch_operands = 0 : i64, tpu.core_type = #tpu.core_type<tc>, window_params = [{transform_indices = @transform_0, window_bounds = array<i64: 16, 128>}, {transform_indices = @transform_1, window_bounds = array<i64: 16, 128>}, {transform_indices = @transform_2, window_bounds = array<i64: 16, 128>}]} {
    %c0 = arith.constant 0 : index
    %c0_0 = arith.constant 0 : index
    %0 = vector.load %arg1[%c0, %c0_0] : memref<16x128xf32, #tpu.memory_space<vmem>>, vector<16x128xf32>
    %c0_1 = arith.constant 0 : index
    %c0_2 = arith.constant 0 : index
    %1 = vector.load %arg2[%c0_1, %c0_2] : memref<16x128xf32, #tpu.memory_space<vmem>>, vector<16x128xf32>
    %2 = math.absf %0 : vector<16x128xf32>
    %cst = arith.constant 0.000000e+00 : f32
    %3 = vector.broadcast %cst : f32 to vector<16x128xf32>
    %4 = arith.subf %3, %2 : vector<16x128xf32>
    %5 = math.exp %4 : vector<16x128xf32>
    %cst_3 = arith.constant 1.000000e+00 : f32
    %6 = vector.broadcast %cst_3 : f32 to vector<16x128xf32>
    %7 = arith.addf %6, %5 : vector<16x128xf32>
    %cst_4 = arith.constant 1.000000e+00 : f32
    %8 = vector.broadcast %cst_4 : f32 to vector<16x128xf32>
    %9 = arith.divf %8, %7 : vector<16x128xf32>
    %cst_5 = arith.constant 0.000000e+00 : f32
    %10 = vector.broadcast %cst_5 : f32 to vector<16x128xf32>
    %11 = arith.cmpf oge, %0, %10 : vector<16x128xf32>
    %12 = arith.mulf %5, %9 : vector<16x128xf32>
    %13 = arith.select %11, %9, %12 : vector<16x128xi1>, vector<16x128xf32>
    %14 = arith.mulf %5, %9 : vector<16x128xf32>
    %15 = arith.select %11, %14, %9 : vector<16x128xi1>, vector<16x128xf32>
    %cst_6 = arith.constant 0.000000e+00 : f32
    %16 = vector.broadcast %cst_6 : f32 to vector<16x128xf32>
    %17 = arith.maximumf %0, %16 : vector<16x128xf32>
    %18 = arith.mulf %0, %1 : vector<16x128xf32>
    %19 = arith.subf %17, %18 : vector<16x128xf32>
    %20 = math.log1p %5 : vector<16x128xf32>
    %21 = arith.addf %19, %20 : vector<16x128xf32>
    %cst_7 = arith.constant 1.000000e+00 : f32
    %22 = vector.broadcast %cst_7 : f32 to vector<16x128xf32>
    %23 = arith.cmpf oeq, %1, %22 : vector<16x128xf32>
    %24 = arith.select %23, %15, %13 : vector<16x128xi1>, vector<16x128xf32>
    %cst_8 = arith.constant -5.000000e-01 : f32
    %25 = vector.broadcast %cst_8 : f32 to vector<16x128xf32>
    %26 = arith.mulf %1, %25 : vector<16x128xf32>
    %cst_9 = arith.constant 7.500000e-01 : f32
    %27 = vector.broadcast %cst_9 : f32 to vector<16x128xf32>
    %28 = arith.addf %27, %26 : vector<16x128xf32>
    %29 = arith.mulf %24, %24 : vector<16x128xf32>
    %30 = arith.mulf %28, %29 : vector<16x128xf32>
    %31 = arith.mulf %30, %21 : vector<16x128xf32>
    %c0_10 = arith.constant 0 : index
    %c0_11 = arith.constant 0 : index
    %32 = vector.load %arg3[%c0_10, %c0_11] : memref<16x128xf32, #tpu.memory_space<vmem>>, vector<16x128xf32>
    tpu.vector_store %arg3[%c0_10, %c0_11], %31 {strides = array<i32>} : memref<16x128xf32, #tpu.memory_space<vmem>>, vector<16x128xf32>,
    return
  }
  func.func @transform_0(%arg0: i32) -> (i32, i32) {
    %c0_i32 = arith.constant 0 : i32
    %c0_i32_0 = arith.constant 0 : i32
    return %arg0, %c0_i32 : i32, i32
  }
  func.func @transform_1(%arg0: i32) -> (i32, i32) {
    %c0_i32 = arith.constant 0 : i32
    %c0_i32_0 = arith.constant 0 : i32
    return %arg0, %c0_i32 : i32, i32
  }
  func.func @transform_2(%arg0: i32) -> (i32, i32) {
    %c0_i32 = arith.constant 0 : i32
    %c0_i32_0 = arith.constant 0 : i32
    return %arg0, %c0_i32 : i32, i32
  }
}

</mosaic_0001>

<llo_original>
// kernel: tpu_custom_call.1
$region0: #{tpu_custom_call.1}
  #allocation0 [shape = 'u32[]', space=smem, size = 0x4, offset = 0x4, fixed_abs, tag = 'smem constant byte address 0x4 - core index']
  #allocation1 [shape = 'u32[72,128]{1,0:T(1,128)}', space=vmem, size = 0x9000, scoped, tag = 'internal scratch']
  %s0 = inlined_call_operand.hbm [shape: f32[16,128], index: 0, kind: input, shape index: {}]
  %s1 = inlined_call_operand.hbm [shape: f32[16,128], index: 1, kind: input, shape index: {}]
  %s2 = inlined_call_operand.hbm [shape: f32[16,128], index: 2, kind: output, shape index: {}]
  %s3 = sld [smem:[#allocation0]]
  $region26: #{tpu_custom_call.1} parent=0
    _
  %s5 = ssub.s32 1, %s3
  %s6 = scalar_select 0, %s5, %s3
  $region1: #{tpu_custom_call.1} parent=0
    #allocation2 [shape = 'u8[8192]{0}', space=vmem, size = 0x2000, scoped, tag = 'input window, operand 0, single buffered']
    #allocation3 [shape = 's32[1]{0}', space=sflag, size = 0x4, scoped, tag = 'scoped memory for tpu_custom_call.1']
    #allocation4 [shape = 's32[1]{0}', space=sflag, size = 0x4, scoped, tag = 'scoped memory for tpu_custom_call.1']
    #allocation5 [shape = 'u8[8192]{0}', space=vmem, size = 0x2000, scoped, tag = 'input window, operand 1, single buffered']
    #allocation6 [shape = 's32[1]{0}', space=sflag, size = 0x4, scoped, tag = 'scoped memory for tpu_custom_call.1']
    #allocation7 [shape = 'u8[8192]{0}', space=vmem, size = 0x2000, scoped, tag = 'output window, operand 0, single buffered']
    %7 = vsyncpa [#allocation3], 0
    %8 = vsyncpa [#allocation6], 0
    %9 = vsyncpa [#allocation4], 0
    // Predicated region
    $region2: #{tpu_custom_call.1} parent=1 // pred_check
      _
    $region3: #{tpu_custom_call.1} parent=1 // pred_check_branch
      %11 = sbr.rel (0) target = $region5
    $region4: #{tpu_custom_call.1} parent=1 // pred_region
      %13 = vsyncadd [#allocation3], 0
      %s14 = sshll.u32 %s0, 4
      %s15 = int_to_ptr.hbm [resolvable:$true] %s14
      %s16 = sshll.u32 [#allocation2], 4
      %s17 = int_to_ptr.vmem [resolvable:$true] %s16
      %22 = dma.hbm_to_vmem [thread:$0]  %s15, 256, %s17, [#allocation3], 128, 128, 8
    $region5: #{tpu_custom_call.1} parent=1 // pred_fallthru
      _
    // Predicated region
    $region6: #{tpu_custom_call.1} parent=1 // pred_check
      _
    $region7: #{tpu_custom_call.1} parent=1 // pred_check_branch
      %24 = sbr.rel (0) target = $region9
    $region8: #{tpu_custom_call.1} parent=1 // pred_region
      %26 = vsyncadd [#allocation6], 0
      %s27 = sshll.u32 %s1, 4
      %s28 = int_to_ptr.hbm [resolvable:$true] %s27
      %s29 = sshll.u32 [#allocation5], 4
      %s30 = int_to_ptr.vmem [resolvable:$true] %s29
      %35 = dma.hbm_to_vmem [thread:$0]  %s28, 256, %s30, [#allocation6], 128, 128, 8
    $region9: #{tpu_custom_call.1} parent=1 // pred_fallthru
      _
    // Predicated region
    $region10: #{tpu_custom_call.1} parent=1 // pred_check
      _
    $region11: #{tpu_custom_call.1} parent=1 // pred_check_branch
      %37 = sbr.rel (0) target = $region13
    $region12: #{tpu_custom_call.1} parent=1 // pred_region
      %39 = dma.done [#allocation3], 256
    $region13: #{tpu_custom_call.1} parent=1 // pred_fallthru
      _
    // Predicated region
    $region14: #{tpu_custom_call.1} parent=1 // pred_check
      _
    $region15: #{tpu_custom_call.1} parent=1 // pred_check_branch
      %41 = sbr.rel (0) target = $region17
    $region16: #{tpu_custom_call.1} parent=1 // pred_region
      %43 = dma.done [#allocation6], 256
    $region17: #{tpu_custom_call.1} parent=1 // pred_fallthru
      _
    %v44 = vld [vmem:[#allocation2] sm:$0xff]
    %v45 = vld [vmem:[#allocation2 + $0x8] sm:$0xff]
    %v46 = vld [vmem:[#allocation5] sm:$0xff]
    %v47 = vld [vmem:[#allocation5 + $0x8] sm:$0xff]
    %v48 = vand.u32 2147483647, %v44
    %v49 = vand.u32 2147483647, %v45
    %v50 = vsub.f32 0.0, %v48
    %v51 = vsub.f32 0.0, %v49
    %v52 = vmul.f32 %v50, 1.442695
    %v53 = vpow.pop %v52
    %v54 = vmul.f32 %v51, 1.442695
    %v55 = vpow.pop %v54
    %v56 = vadd.f32 %v53, 1.0
    %v57 = vadd.f32 %v55, 1.0
    %v58 = vrcp.pop %v56
    %v59 = vmul.f32 %v56, %v58
    %v60 = vsub.f32 1.0, %v59
    %v61 = vmul.f32 %v58, %v60
    %v62 = vadd.f32 %v58, %v61
    %vm63 = vweird.f32 %v56
    %vm64 = vweird.f32 %v58
    %vm65 = vmor %vm63, %vm64
    %v66 = vsel %vm65, %v58, %v62
    %v67 = vand.u32 2147483647, %v56
    %vm68 = vcmp.eq.f32.partialorder %v67, 8.507059e+37
    %v69 = vand.u32 %v56, 2147483648
    %v70 = vor.u32 1.1754944e-38, %v69
    %v71 = vsel %vm68, %v70, %v66
    %v72 = vmul.f32 1.0, %v71
    %v73 = vrcp.pop %v57
    %v74 = vmul.f32 %v57, %v73
    %v75 = vsub.f32 1.0, %v74
    %v76 = vmul.f32 %v73, %v75
    %v77 = vadd.f32 %v73, %v76
    %vm78 = vweird.f32 %v57
    %vm79 = vweird.f32 %v73
    %vm80 = vmor %vm78, %vm79
    %v81 = vsel %vm80, %v73, %v77
    %v82 = vand.u32 2147483647, %v57
    %vm83 = vcmp.eq.f32.partialorder %v82, 8.507059e+37
    %v84 = vand.u32 %v57, 2147483648
    %v85 = vor.u32 1.1754944e-38, %v84
    %v86 = vsel %vm83, %v85, %v81
    %v87 = vmul.f32 1.0, %v86
    %vm88 = vcmp.ge.f32.partialorder %v44, 0.0
    %vm89 = vcmp.ge.f32.partialorder %v45, 0.0
    %v90 = vmul.f32 %v53, %v72
    %v91 = vmul.f32 %v55, %v87
    %v92 = vsel %vm88, %v72, %v90
    %v93 = vsel %vm89, %v87, %v91
    %v94 = vsel %vm88, %v90, %v72
    %v95 = vsel %vm89, %v91, %v87
    %v96 = vmax.f32 %v44, 0.0
    %v97 = vmax.f32 %v45, 0.0
    %v98 = vmul.f32 %v44, %v46
    %v99 = vmul.f32 %v45, %v47
    %v100 = vsub.f32 %v96, %v98
    %v101 = vsub.f32 %v97, %v99
    %v102 = vadd.f32 %v53, 1.0
    %v103 = vlog2.pop %v102
    %v104 = vmul.f32 %v103, 0.6931472
    %v105 = vmul.f32 -0.5, %v53
    %v106 = vadd.f32 %v105, 1.0
    %v107 = vmul.f32 %v106, %v53
    %v108 = vand.u32 2147483647, %v53
    %vm109 = vcmp.lt.f32.partialorder %v108, 0.0004427343
    %v110 = vsel %vm109, %v107, %v104
    %v111 = vadd.f32 %v55, 1.0
    %v112 = vlog2.pop %v111
    %v113 = vmul.f32 %v112, 0.6931472
    %v114 = vmul.f32 -0.5, %v55
    %v115 = vadd.f32 %v114, 1.0
    %v116 = vmul.f32 %v115, %v55
    %v117 = vand.u32 2147483647, %v55
    %vm118 = vcmp.lt.f32.partialorder %v117, 0.0004427343
    %v119 = vsel %vm118, %v116, %v113
    %v120 = vadd.f32 %v100, %v110
    %v121 = vadd.f32 %v101, %v119
    %vm122 = vcmp.eq.f32.partialorder %v46, 1.0
    %vm123 = vcmp.eq.f32.partialorder %v47, 1.0
    %v124 = vsel %vm122, %v94, %v92
    %v125 = vsel %vm123, %v95, %v93
    %v126 = vmul.f32 %v46, -0.5
    %v127 = vmul.f32 %v47, -0.5
    %v128 = vadd.f32 %v126, 0.75
    %v129 = vadd.f32 %v127, 0.75
    %v130 = vmul.f32 %v124, %v124
    %v131 = vmul.f32 %v125, %v125
    %v132 = vmul.f32 %v128, %v130
    %v133 = vmul.f32 %v129, %v131
    %v134 = vmul.f32 %v132, %v120
    %v135 = vmul.f32 %v133, %v121
    %136 = vst [vmem:[#allocation7] sm:$0xff] %v134
    %137 = vst [vmem:[#allocation7 + $0x8] sm:$0xff] %v135
    // Predicated region
    $region18: #{tpu_custom_call.1} parent=1 // pred_check
      _
    $region19: #{tpu_custom_call.1} parent=1 // pred_check_branch
      %139 = sbr.rel (0) target = $region21
    $region20: #{tpu_custom_call.1} parent=1 // pred_region
      %141 = vsyncadd [#allocation4], 0
      %s142 = sshll.u32 [#allocation7], 4
      %s143 = int_to_ptr.vmem [resolvable:$true] %s142
      %s144 = sshll.u32 %s2, 4
      %s145 = int_to_ptr.hbm [resolvable:$true] %s144
      %150 = dma.vmem_to_hbm [thread:$0]  %s143, 256, %s145, [#allocation4], 128, 128, 8
    $region21: #{tpu_custom_call.1} parent=1 // pred_fallthru
      _
    // Predicated region
    $region22: #{tpu_custom_call.1} parent=1 // pred_check
      _
    $region23: #{tpu_custom_call.1} parent=1 // pred_check_branch
      %152 = sbr.rel (0) target = $region25
    $region24: #{tpu_custom_call.1} parent=1 // pred_region
      %154 = dma.done [#allocation4], 256
    $region25: #{tpu_custom_call.1} parent=1 // pred_fallthru
      _
    %155 = vsyncpa [#allocation3], 1
    %156 = vsyncpa [#allocation6], 1
    %157 = vsyncpa [#allocation4], 1

</llo_original>
